<compile_context>
chip_gen: v5e
topology: v5e:2x2
jax: 0.10.0
libtpu: 0.0.40
codegen_flags: <defaults>
</compile_context>

<pallas_src>
import jax
import jax.numpy as jnp
from jax.experimental import pallas as pl
from jax.experimental.pallas import tpu as pltpu


def _round_up(a, b):
    return ((a + b - 1) // b) * b


def _make_loss_stats_kernel(C, tile_rows, s_total):
    """Per-tile statistics kernel (closes over static sizes).

    Accumulates, per class c, four per-lane partial sums into the resident output
    block (rows 4c..4c+3): tp, colsum_p (=tp+fp), count (=tp+fn), nll.
    """

    def kernel(x_ref, y_ref, stat_ref):
        s_idx = pl.program_id(1)

        # Zero the resident per-batch accumulator at the first spatial tile.
        @pl.when(s_idx == 0)
        def _():
            stat_ref[...] = jnp.zeros_like(stat_ref)

        x = x_ref[0].astype(jnp.float32)          # (C, TR, 128) logits (cast at load)
        y = y_ref[0]                              # (TR, 128) int32 labels

        # Spatial validity mask (wrapper padding + block-padding tail rows).
        rows = jax.lax.broadcasted_iota(jnp.int32, (tile_rows, 128), 0)
        lanes = jax.lax.broadcasted_iota(jnp.int32, (tile_rows, 128), 1)
        pos = (s_idx * tile_rows + rows) * 128 + lanes
        valid_b = pos < s_total                   # (TR, 128) bool
        valid_f = valid_b.astype(jnp.float32)

        # Kill potential block-padding garbage so exp/log stay finite (NaN-safe).
        x = jnp.where(valid_b[None, :, :], x, 0.0)

        # softmax / log-softmax along the (leading) class axis: C-1 VPU maxes/adds,
        # one exp per element, one log + one reciprocal per pixel (EUP).
        m = jnp.max(x, axis=0)                    # (TR, 128)
        ex = jnp.exp(x - m[None, :, :])           # (C, TR, 128)
        se = jnp.sum(ex, axis=0)                  # (TR, 128)
        scale = pl.reciprocal(se) * valid_f       # masked 1/sum (exact reciprocal)
        base = m + jnp.log(se)                    # per-pixel log-sum-exp

        # Per-class statistics.  Where y == c the picked logit is exactly x[c], so the
        # per-class NLL is sum(onehot_c * (base - x[c])) with no full-size nll array.
        for c in range(C):
            onehot_c = jnp.where(y == c, valid_f, 0.0)                 # (TR, 128)
            p_c = ex[c] * scale                                        # masked prob
            row_tp = jnp.sum(p_c * onehot_c, axis=0, keepdims=True)    # (1, 128)
            row_col = jnp.sum(p_c, axis=0, keepdims=True)              # tp + fp
            row_cnt = jnp.sum(onehot_c, axis=0, keepdims=True)         # tp + fn
            row_nll = jnp.sum(onehot_c * (base - x[c]), axis=0, keepdims=True)
            r = 4 * c
            stat_ref[0, r + 0:r + 1, :] += row_tp
            stat_ref[0, r + 1:r + 2, :] += row_col
            stat_ref[0, r + 2:r + 3, :] += row_cnt
            stat_ref[0, r + 3:r + 4, :] += row_nll

    return kernel


def dice_and_ce_loss(x, y, class_weight,
                     weight_ce=1.0, weight_dc=1.0,
                     batch_dice=False, smooth=1e-5,
                     tile_rows=None):
    """x: (N, C, H, W) logits (any float dtype); y: (N, H, W) integer labels."""
    N, C, H, W = x.shape
    S = H * W

    # Spatial pixels laid out on an (R, 128) grid (lanes fast, sublanes slow) so every
    # vreg is fully occupied regardless of how small C is.
    S_pad = _round_up(S, 128)
    R = S_pad // 128
    if R < 8:                                  # keep at least one full (8,128) tile
        R = 8
        S_pad = R * 128

    x_r = x.reshape(N, C, S)
    y_r = y.reshape(N, S)
    if y_r.dtype != jnp.int32:
        y_r = y_r.astype(jnp.int32)
    if S_pad != S:
        # One-time pad to a 128-multiple (reshape is free otherwise); padded pixels
        # are masked inside the kernel via the position iota.
        x_r = jnp.pad(x_r, ((0, 0), (0, 0), (0, S_pad - S)))
        y_r = jnp.pad(y_r, ((0, 0), (0, S_pad - S)))
    x_r = x_r.reshape(N, C, R, 128)
    y_r = y_r.reshape(N, R, 128)

    # Generation-aware tile sizing: as big as fits in (a fraction of) VMEM so each
    # grid step moves MiBs of HBM and the ~0.35us/step overhead is amortized.
    try:
        vmem_cap = int(pltpu.get_tpu_info().vmem_capacity_bytes)
    except Exception:
        vmem_cap = 64 << 20                    # conservative (v7x) fallback
    vmem_limit = min(int(0.70 * vmem_cap), 96 << 20)

    x_bytes = jnp.dtype(x.dtype).itemsize
    per_row = (2 * C * x_bytes * 128           # double-buffered logits block
               + 2 * 4 * 128                   # double-buffered int32 labels block
               + (2 * C + 8) * 4 * 128)        # in-kernel f32 temporaries
    if tile_rows is None:
        tile_rows = (vmem_limit // 2) // per_row
    tile_rows = max(8, (int(tile_rows) // 8) * 8)
    tile_rows = min(tile_rows, _round_up(R, 8))
    n_s = pl.cdiv(R, tile_rows)

    ROWS = _round_up(4 * C, 8)                 # 4 stats per class, sublane-padded
    kernel = _make_loss_stats_kernel(C, tile_rows, S)

    stats = pl.pallas_call(
        kernel,
        out_shape=jax.ShapeDtypeStruct((N, ROWS, 128), jnp.float32),
        grid_spec=pltpu.PrefetchScalarGridSpec(
            num_scalar_prefetch=0,
            grid=(N, n_s),
            in_specs=[
                pl.BlockSpec((1, C, tile_rows, 128), lambda n, s: (n, 0, s, 0)),
                pl.BlockSpec((1, tile_rows, 128), lambda n, s: (n, s, 0)),
            ],
            out_specs=pl.BlockSpec((1, ROWS, 128), lambda n, s: (n, 0, 0)),
        ),
        compiler_params=pltpu.CompilerParams(
            # TODO(synk): on v7x use CORE_PARALLEL on a leading axis to split the grid
            # across both TensorCores when N == 1.
            dimension_semantics=("parallel", "arbitrary"),
            vmem_limit_bytes=vmem_limit),
    )(x_r, y_r)

    # Tiny epilogue in plain JAX (lane reduction of the per-lane partial sums).
    per = stats[:, :4 * C, :].reshape(N, C, 4, 128).sum(axis=-1)   # (N, C, 4)
    tp = per[..., 0]
    colsum_p = per[..., 1]       # tp + fp
    count = per[..., 2]          # tp + fn
    nll = per[..., 3]            # sum of -logp at the true class
    fp = colsum_p - tp
    fn = count - tp

    if batch_dice:
        tp_d, fp_d, fn_d = tp.sum(0), fp.sum(0), fn.sum(0)
    else:
        tp_d, fp_d, fn_d = tp, fp, fn
    dc = (2.0 * tp_d + smooth) / (2.0 * tp_d + fp_d + fn_d + smooth)
    dc_loss = -jnp.mean(dc)

    # Class-weighted CE (PyTorch CrossEntropyLoss 'mean' with weights):
    #   sum_i w[y_i] * (-logp_i[y_i]) / sum_i w[y_i]
    w = class_weight.astype(jnp.float32)
    ce_loss = jnp.sum(nll * w[None, :]) / jnp.sum(count * w[None, :])

    return weight_dc * dc_loss + weight_ce * ce_loss


def _reference_loss(x, y, class_weight,
                    weight_ce=1.0, weight_dc=1.0,
                    batch_dice=False, smooth=1e-5):
    """Pure-JAX reference mirroring SoftDiceLoss + nn.CrossEntropyLoss(weight)."""
    N, C, H, W = x.shape
    logp = jax.nn.log_softmax(x.astype(jnp.float32), axis=1)  # (N,C,H,W)
    p = jnp.exp(logp)
    onehot = jax.nn.one_hot(y, C, axis=1, dtype=jnp.float32)  # (N,C,H,W)

    axes = (0, 2, 3) if batch_dice else (2, 3)
    tp = jnp.sum(p * onehot, axis=axes)
    fp = jnp.sum(p * (1.0 - onehot), axis=axes)
    fn = jnp.sum((1.0 - p) * onehot, axis=axes)
    dc = (2.0 * tp + smooth) / (2.0 * tp + fp + fn + smooth)
    dc_loss = -jnp.mean(dc)

    picked = jnp.take_along_axis(logp, y[:, None], axis=1)[:, 0]  # (N,H,W)
    wpix = class_weight[y]                                        # (N,H,W)
    ce_loss = jnp.sum(-wpix * picked) / jnp.sum(wpix)

    return weight_dc * dc_loss + weight_ce * ce_loss


if __name__ == "__main__":
    key = jax.random.PRNGKey(0)
    kx, ky = jax.random.split(key)

    # Synthetic deterministic stand-in for cfg.default_w (per-class CE weights).
    class_weight = jnp.array([0.5, 1.0, 1.5, 2.0], dtype=jnp.float32)

    # Primary check: small input (S = 256, padded up to one (8,128) tile).
    N, C, H, W = 2, 4, 16, 16
    x = jax.random.normal(kx, (N, C, H, W), dtype=jnp.float32)
    y = jax.random.randint(ky, (N, H, W), 0, C, dtype=jnp.int32)

    loss = dice_and_ce_loss(x, y, class_weight,
                            weight_ce=1.0, weight_dc=1.0, batch_dice=False)
    loss = jax.block_until_ready(loss)
    ref = _reference_loss(x, y, class_weight,
                          weight_ce=1.0, weight_dc=1.0, batch_dice=False)
    assert jnp.allclose(loss, ref, rtol=1e-5, atol=1e-5), (loss, ref)

    # Secondary check: spatial size that is NOT a multiple of 128 and a forced small
    # tile so the multi-tile accumulator path and the masked tail block are exercised.
    H2 = W2 = 40                                   # S = 1600 -> R = 13, tile_rows = 8
    x2 = jax.random.normal(jax.random.PRNGKey(3), (N, C, H2, W2), dtype=jnp.float32)
    y2 = jax.random.randint(jax.random.PRNGKey(4), (N, H2, W2), 0, C, dtype=jnp.int32)

    loss2 = dice_and_ce_loss(x2, y2, class_weight,
                             weight_ce=1.0, weight_dc=1.0, batch_dice=True,
                             tile_rows=8)
    loss2 = jax.block_until_ready(loss2)
    ref2 = _reference_loss(x2, y2, class_weight,
                           weight_ce=1.0, weight_dc=1.0, batch_dice=True)
    assert jnp.allclose(loss2, ref2, rtol=1e-5, atol=1e-5), (loss2, ref2)

    print("KERNEL_OK")
</pallas_src>

<mosaic_0001>
module attributes {stable_mosaic.version = 11 : i64} {
  func.func @kernel(%arg0: i32, %arg1: i32, %arg2: memref<1x4x8x128xf32, #tpu.memory_space<vmem>>, %arg3: memref<1x8x128xi32, #tpu.memory_space<vmem>>, %arg4: memref<1x16x128xf32, #tpu.memory_space<vmem>>) attributes {dimension_semantics = [#tpu.dimension_semantics<parallel>, #tpu.dimension_semantics<arbitrary>], iteration_bounds = array<i64: 2, 1>, scalar_prefetch = 0 : i64, scratch_operands = 0 : i64, tpu.core_type = #tpu.core_type<tc>, window_params = [{transform_indices = @transform_0, window_bounds = array<i64: 1, 4, 8, 128>}, {transform_indices = @transform_1, window_bounds = array<i64: 1, 8, 128>}, {transform_indices = @transform_2, window_bounds = array<i64: 1, 16, 128>}]} {
    %c0_i32 = arith.constant 0 : i32
    %0 = arith.cmpi eq, %arg1, %c0_i32 : i32
    %1 = arith.extui %0 : i1 to i32
    %c0_i32_0 = arith.constant 0 : i32
    %2 = arith.cmpi ne, %1, %c0_i32_0 : i32
    scf.if %2 {
      %cst_111 = arith.constant 0.000000e+00 : f32
      %210 = vector.broadcast %cst_111 : f32 to vector<1x16x128xf32>
      %c0_112 = arith.constant 0 : index
      %c0_113 = arith.constant 0 : index
      %c0_114 = arith.constant 0 : index
      %211 = vector.load %arg4[%c0_112, %c0_113, %c0_114] : memref<1x16x128xf32, #tpu.memory_space<vmem>>, vector<1x16x128xf32>
      tpu.vector_store %arg4[%c0_112, %c0_113, %c0_114], %210 {strides = array<i32>} : memref<1x16x128xf32, #tpu.memory_space<vmem>>, vector<1x16x128xf32>,
    } else {
    }
    %c0 = arith.constant 0 : index
    %c0_1 = arith.constant 0 : index
    %c0_2 = arith.constant 0 : index
    %c0_3 = arith.constant 0 : index
    %3 = vector.load %arg2[%c0, %c0_1, %c0_2, %c0_3] : memref<1x4x8x128xf32, #tpu.memory_space<vmem>>, vector<1x4x8x128xf32>
    %4 = vector.shape_cast %3 : vector<1x4x8x128xf32> to vector<4x8x128xf32>
    %c0_4 = arith.constant 0 : index
    %c0_5 = arith.constant 0 : index
    %c0_6 = arith.constant 0 : index
    %5 = vector.load %arg3[%c0_4, %c0_5, %c0_6] : memref<1x8x128xi32, #tpu.memory_space<vmem>>, vector<1x8x128xi32>
    %6 = vector.shape_cast %5 : vector<1x8x128xi32> to vector<8x128xi32>
    %7 = tpu.iota {dimensions = array<i32: 0>} : vector<8x128xi32>
    %8 = tpu.iota {dimensions = array<i32: 1>} : vector<8x128xi32>
    %c8_i32 = arith.constant 8 : i32
    %9 = arith.muli %arg1, %c8_i32 : i32
    %10 = vector.broadcast %9 : i32 to vector<8x128xi32>
    %11 = arith.addi %10, %7 : vector<8x128xi32>
    %c128_i32 = arith.constant 128 : i32
    %12 = vector.broadcast %c128_i32 : i32 to vector<8x128xi32>
    %13 = arith.muli %11, %12 : vector<8x128xi32>
    %14 = arith.addi %13, %8 : vector<8x128xi32>
    %c256_i32 = arith.constant 256 : i32
    %15 = vector.broadcast %c256_i32 : i32 to vector<8x128xi32>
    %16 = arith.cmpi slt, %14, %15 : vector<8x128xi32>
    %17 = arith.extui %16 : vector<8x128xi1> to vector<8x128xi32>
    %18 = arith.sitofp %17 : vector<8x128xi32> to vector<8x128xf32>
    %19 = vector.shape_cast %16 : vector<8x128xi1> to vector<1x8x128xi1>
    %cst = arith.constant 0.000000e+00 : f32
    %20 = vector.shape_cast %19 : vector<1x8x128xi1> to vector<1x8x128xi1>
    %21 = vector.broadcast %20 : vector<1x8x128xi1> to vector<4x8x128xi1>
    %22 = vector.broadcast %cst : f32 to vector<4x8x128xf32>
    %23 = arith.select %21, %4, %22 : vector<4x8x128xi1>, vector<4x8x128xf32>
    %cst_7 = arith.constant dense<0xFF800000> : vector<8x128xf32>
    %24 = vector.multi_reduction <maximumf>, %23, %cst_7 [0] : vector<4x8x128xf32> to vector<8x128xf32>
    %25 = vector.shape_cast %24 : vector<8x128xf32> to vector<1x8x128xf32>
    %26 = vector.broadcast %25 : vector<1x8x128xf32> to vector<4x8x128xf32>
    %27 = arith.subf %23, %26 : vector<4x8x128xf32>
    %28 = math.exp %27 : vector<4x8x128xf32>
    %cst_8 = arith.constant dense<0.000000e+00> : vector<8x128xf32>
    %29 = vector.multi_reduction <add>, %28, %cst_8 [0] : vector<4x8x128xf32> to vector<8x128xf32>
    %30 = tpu.reciprocal %29 : vector<8x128xf32> -> vector<8x128xf32>
    %31 = arith.mulf %30, %18 : vector<8x128xf32>
    %32 = math.log %29 : vector<8x128xf32>
    %33 = arith.addf %24, %32 : vector<8x128xf32>
    %c0_i32_9 = arith.constant 0 : i32
    %34 = vector.broadcast %c0_i32_9 : i32 to vector<8x128xi32>
    %35 = arith.cmpi eq, %6, %34 : vector<8x128xi32>
    %cst_10 = arith.constant 0.000000e+00 : f32
    %36 = vector.broadcast %cst_10 : f32 to vector<8x128xf32>
    %37 = arith.select %35, %18, %36 : vector<8x128xi1>, vector<8x128xf32>
    %38 = vector.extract_strided_slice %28 {offsets = [0, 0, 0], sizes = [1, 8, 128], strides = [1, 1, 1]} : vector<4x8x128xf32> to vector<1x8x128xf32>
    %39 = vector.shape_cast %38 : vector<1x8x128xf32> to vector<8x128xf32>
    %40 = arith.mulf %39, %31 : vector<8x128xf32>
    %41 = arith.mulf %40, %37 : vector<8x128xf32>
    %cst_11 = arith.constant dense<0.000000e+00> : vector<128xf32>
    %42 = vector.multi_reduction <add>, %41, %cst_11 [0] : vector<8x128xf32> to vector<128xf32>
    %43 = vector.shape_cast %42 : vector<128xf32> to vector<1x128xf32>
    %cst_12 = arith.constant dense<0.000000e+00> : vector<128xf32>
    %44 = vector.multi_reduction <add>, %40, %cst_12 [0] : vector<8x128xf32> to vector<128xf32>
    %45 = vector.shape_cast %44 : vector<128xf32> to vector<1x128xf32>
    %cst_13 = arith.constant dense<0.000000e+00> : vector<128xf32>
    %46 = vector.multi_reduction <add>, %37, %cst_13 [0] : vector<8x128xf32> to vector<128xf32>
    %47 = vector.shape_cast %46 : vector<128xf32> to vector<1x128xf32>
    %48 = vector.extract_strided_slice %23 {offsets = [0, 0, 0], sizes = [1, 8, 128], strides = [1, 1, 1]} : vector<4x8x128xf32> to vector<1x8x128xf32>
    %49 = vector.shape_cast %48 : vector<1x8x128xf32> to vector<8x128xf32>
    %50 = arith.subf %33, %49 : vector<8x128xf32>
    %51 = arith.mulf %37, %50 : vector<8x128xf32>
    %cst_14 = arith.constant dense<0.000000e+00> : vector<128xf32>
    %52 = vector.multi_reduction <add>, %51, %cst_14 [0] : vector<8x128xf32> to vector<128xf32>
    %53 = vector.shape_cast %52 : vector<128xf32> to vector<1x128xf32>
    %c0_15 = arith.constant 0 : index
    %c0_16 = arith.constant 0 : index
    %c0_17 = arith.constant 0 : index
    %54 = vector.load %arg4[%c0_15, %c0_16, %c0_17] : memref<1x16x128xf32, #tpu.memory_space<vmem>>, vector<1x1x128xf32>
    %55 = vector.shape_cast %54 : vector<1x1x128xf32> to vector<1x128xf32>
    %56 = arith.addf %55, %43 : vector<1x128xf32>
    %c0_18 = arith.constant 0 : index
    %c0_19 = arith.constant 0 : index
    %c0_20 = arith.constant 0 : index
    %57 = vector.load %arg4[%c0_18, %c0_19, %c0_20] : memref<1x16x128xf32, #tpu.memory_space<vmem>>, vector<1x1x128xf32>
    %58 = vector.shape_cast %57 : vector<1x1x128xf32> to vector<1x128xf32>
    %59 = vector.shape_cast %56 : vector<1x128xf32> to vector<1x1x128xf32>
    tpu.vector_store %arg4[%c0_18, %c0_19, %c0_20], %59 {strides = array<i32>} : memref<1x16x128xf32, #tpu.memory_space<vmem>>, vector<1x1x128xf32>,
    %c0_21 = arith.constant 0 : index
    %c1 = arith.constant 1 : index
    %c0_22 = arith.constant 0 : index
    %60 = vector.load %arg4[%c0_21, %c1, %c0_22] : memref<1x16x128xf32, #tpu.memory_space<vmem>>, vector<1x1x128xf32>
    %61 = vector.shape_cast %60 : vector<1x1x128xf32> to vector<1x128xf32>
    %62 = arith.addf %61, %45 : vector<1x128xf32>
    %c0_23 = arith.constant 0 : index
    %c1_24 = arith.constant 1 : index
    %c0_25 = arith.constant 0 : index
    %63 = vector.load %arg4[%c0_23, %c1_24, %c0_25] : memref<1x16x128xf32, #tpu.memory_space<vmem>>, vector<1x1x128xf32>
    %64 = vector.shape_cast %63 : vector<1x1x128xf32> to vector<1x128xf32>
    %65 = vector.shape_cast %62 : vector<1x128xf32> to vector<1x1x128xf32>
    tpu.vector_store %arg4[%c0_23, %c1_24, %c0_25], %65 {strides = array<i32>} : memref<1x16x128xf32, #tpu.memory_space<vmem>>, vector<1x1x128xf32>,
    %c0_26 = arith.constant 0 : index
    %c2 = arith.constant 2 : index
    %c0_27 = arith.constant 0 : index
    %66 = vector.load %arg4[%c0_26, %c2, %c0_27] : memref<1x16x128xf32, #tpu.memory_space<vmem>>, vector<1x1x128xf32>
    %67 = vector.shape_cast %66 : vector<1x1x128xf32> to vector<1x128xf32>
    %68 = arith.addf %67, %47 : vector<1x128xf32>
    %c0_28 = arith.constant 0 : index
    %c2_29 = arith.constant 2 : index
    %c0_30 = arith.constant 0 : index
    %69 = vector.load %arg4[%c0_28, %c2_29, %c0_30] : memref<1x16x128xf32, #tpu.memory_space<vmem>>, vector<1x1x128xf32>
    %70 = vector.shape_cast %69 : vector<1x1x128xf32> to vector<1x128xf32>
    %71 = vector.shape_cast %68 : vector<1x128xf32> to vector<1x1x128xf32>
    tpu.vector_store %arg4[%c0_28, %c2_29, %c0_30], %71 {strides = array<i32>} : memref<1x16x128xf32, #tpu.memory_space<vmem>>, vector<1x1x128xf32>,
    %c0_31 = arith.constant 0 : index
    %c3 = arith.constant 3 : index
    %c0_32 = arith.constant 0 : index
    %72 = vector.load %arg4[%c0_31, %c3, %c0_32] : memref<1x16x128xf32, #tpu.memory_space<vmem>>, vector<1x1x128xf32>
    %73 = vector.shape_cast %72 : vector<1x1x128xf32> to vector<1x128xf32>
    %74 = arith.addf %73, %53 : vector<1x128xf32>
    %c0_33 = arith.constant 0 : index
    %c3_34 = arith.constant 3 : index
    %c0_35 = arith.constant 0 : index
    %75 = vector.load %arg4[%c0_33, %c3_34, %c0_35] : memref<1x16x128xf32, #tpu.memory_space<vmem>>, vector<1x1x128xf32>
    %76 = vector.shape_cast %75 : vector<1x1x128xf32> to vector<1x128xf32>
    %77 = vector.shape_cast %74 : vector<1x128xf32> to vector<1x1x128xf32>
    tpu.vector_store %arg4[%c0_33, %c3_34, %c0_35], %77 {strides = array<i32>} : memref<1x16x128xf32, #tpu.memory_space<vmem>>, vector<1x1x128xf32>,
    %c1_i32 = arith.constant 1 : i32
    %78 = vector.broadcast %c1_i32 : i32 to vector<8x128xi32>
    %79 = arith.cmpi eq, %6, %78 : vector<8x128xi32>
    %cst_36 = arith.constant 0.000000e+00 : f32
    %80 = vector.broadcast %cst_36 : f32 to vector<8x128xf32>
    %81 = arith.select %79, %18, %80 : vector<8x128xi1>, vector<8x128xf32>
    %82 = vector.extract_strided_slice %28 {offsets = [1, 0, 0], sizes = [1, 8, 128], strides = [1, 1, 1]} : vector<4x8x128xf32> to vector<1x8x128xf32>
    %83 = vector.shape_cast %82 : vector<1x8x128xf32> to vector<8x128xf32>
    %84 = arith.mulf %83, %31 : vector<8x128xf32>
    %85 = arith.mulf %84, %81 : vector<8x128xf32>
    %cst_37 = arith.constant dense<0.000000e+00> : vector<128xf32>
    %86 = vector.multi_reduction <add>, %85, %cst_37 [0] : vector<8x128xf32> to vector<128xf32>
    %87 = vector.shape_cast %86 : vector<128xf32> to vector<1x128xf32>
    %cst_38 = arith.constant dense<0.000000e+00> : vector<128xf32>
    %88 = vector.multi_reduction <add>, %84, %cst_38 [0] : vector<8x128xf32> to vector<128xf32>
    %89 = vector.shape_cast %88 : vector<128xf32> to vector<1x128xf32>
    %cst_39 = arith.constant dense<0.000000e+00> : vector<128xf32>
    %90 = vector.multi_reduction <add>, %81, %cst_39 [0] : vector<8x128xf32> to vector<128xf32>
    %91 = vector.shape_cast %90 : vector<128xf32> to vector<1x128xf32>
    %92 = vector.extract_strided_slice %23 {offsets = [1, 0, 0], sizes = [1, 8, 128], strides = [1, 1, 1]} : vector<4x8x128xf32> to vector<1x8x128xf32>
    %93 = vector.shape_cast %92 : vector<1x8x128xf32> to vector<8x128xf32>
    %94 = arith.subf %33, %93 : vector<8x128xf32>
    %95 = arith.mulf %81, %94 : vector<8x128xf32>
    %cst_40 = arith.constant dense<0.000000e+00> : vector<128xf32>
    %96 = vector.multi_reduction <add>, %95, %cst_40 [0] : vector<8x128xf32> to vector<128xf32>
    %97 = vector.shape_cast %96 : vector<128xf32> to vector<1x128xf32>
    %c0_41 = arith.constant 0 : index
    %c4 = arith.constant 4 : index
    %c0_42 = arith.constant 0 : index
    %98 = vector.load %arg4[%c0_41, %c4, %c0_42] : memref<1x16x128xf32, #tpu.memory_space<vmem>>, vector<1x1x128xf32>
    %99 = vector.shape_cast %98 : vector<1x1x128xf32> to vector<1x128xf32>
    %100 = arith.addf %99, %87 : vector<1x128xf32>
    %c0_43 = arith.constant 0 : index
    %c4_44 = arith.constant 4 : index
    %c0_45 = arith.constant 0 : index
    %101 = vector.load %arg4[%c0_43, %c4_44, %c0_45] : memref<1x16x128xf32, #tpu.memory_space<vmem>>, vector<1x1x128xf32>
    %102 = vector.shape_cast %101 : vector<1x1x128xf32> to vector<1x128xf32>
    %103 = vector.shape_cast %100 : vector<1x128xf32> to vector<1x1x128xf32>
    tpu.vector_store %arg4[%c0_43, %c4_44, %c0_45], %103 {strides = array<i32>} : memref<1x16x128xf32, #tpu.memory_space<vmem>>, vector<1x1x128xf32>,
    %c0_46 = arith.constant 0 : index
    %c5 = arith.constant 5 : index
    %c0_47 = arith.constant 0 : index
    %104 = vector.load %arg4[%c0_46, %c5, %c0_47] : memref<1x16x128xf32, #tpu.memory_space<vmem>>, vector<1x1x128xf32>
    %105 = vector.shape_cast %104 : vector<1x1x128xf32> to vector<1x128xf32>
    %106 = arith.addf %105, %89 : vector<1x128xf32>
    %c0_48 = arith.constant 0 : index
    %c5_49 = arith.constant 5 : index
    %c0_50 = arith.constant 0 : index
    %107 = vector.load %arg4[%c0_48, %c5_49, %c0_50] : memref<1x16x128xf32, #tpu.memory_space<vmem>>, vector<1x1x128xf32>
    %108 = vector.shape_cast %107 : vector<1x1x128xf32> to vector<1x128xf32>
    %109 = vector.shape_cast %106 : vector<1x128xf32> to vector<1x1x128xf32>
    tpu.vector_store %arg4[%c0_48, %c5_49, %c0_50], %109 {strides = array<i32>} : memref<1x16x128xf32, #tpu.memory_space<vmem>>, vector<1x1x128xf32>,
    %c0_51 = arith.constant 0 : index
    %c6 = arith.constant 6 : index
    %c0_52 = arith.constant 0 : index
    %110 = vector.load %arg4[%c0_51, %c6, %c0_52] : memref<1x16x128xf32, #tpu.memory_space<vmem>>, vector<1x1x128xf32>
    %111 = vector.shape_cast %110 : vector<1x1x128xf32> to vector<1x128xf32>
    %112 = arith.addf %111, %91 : vector<1x128xf32>
    %c0_53 = arith.constant 0 : index
    %c6_54 = arith.constant 6 : index
    %c0_55 = arith.constant 0 : index
    %113 = vector.load %arg4[%c0_53, %c6_54, %c0_55] : memref<1x16x128xf32, #tpu.memory_space<vmem>>, vector<1x1x128xf32>
    %114 = vector.shape_cast %113 : vector<1x1x128xf32> to vector<1x128xf32>
    %115 = vector.shape_cast %112 : vector<1x128xf32> to vector<1x1x128xf32>
    tpu.vector_store %arg4[%c0_53, %c6_54, %c0_55], %115 {strides = array<i32>} : memref<1x16x128xf32, #tpu.memory_space<vmem>>, vector<1x1x128xf32>,
    %c0_56 = arith.constant 0 : index
    %c7 = arith.constant 7 : index
    %c0_57 = arith.constant 0 : index
    %116 = vector.load %arg4[%c0_56, %c7, %c0_57] : memref<1x16x128xf32, #tpu.memory_space<vmem>>, vector<1x1x128xf32>
    %117 = vector.shape_cast %116 : vector<1x1x128xf32> to vector<1x128xf32>
    %118 = arith.addf %117, %97 : vector<1x128xf32>
    %c0_58 = arith.constant 0 : index
    %c7_59 = arith.constant 7 : index
    %c0_60 = arith.constant 0 : index
    %119 = vector.load %arg4[%c0_58, %c7_59, %c0_60] : memref<1x16x128xf32, #tpu.memory_space<vmem>>, vector<1x1x128xf32>
    %120 = vector.shape_cast %119 : vector<1x1x128xf32> to vector<1x128xf32>
    %121 = vector.shape_cast %118 : vector<1x128xf32> to vector<1x1x128xf32>
    tpu.vector_store %arg4[%c0_58, %c7_59, %c0_60], %121 {strides = array<i32>} : memref<1x16x128xf32, #tpu.memory_space<vmem>>, vector<1x1x128xf32>,
    %c2_i32 = arith.constant 2 : i32
    %122 = vector.broadcast %c2_i32 : i32 to vector<8x128xi32>
    %123 = arith.cmpi eq, %6, %122 : vector<8x128xi32>
    %cst_61 = arith.constant 0.000000e+00 : f32
    %124 = vector.broadcast %cst_61 : f32 to vector<8x128xf32>
    %125 = arith.select %123, %18, %124 : vector<8x128xi1>, vector<8x128xf32>
    %126 = vector.extract_strided_slice %28 {offsets = [2, 0, 0], sizes = [1, 8, 128], strides = [1, 1, 1]} : vector<4x8x128xf32> to vector<1x8x128xf32>
    %127 = vector.shape_cast %126 : vector<1x8x128xf32> to vector<8x128xf32>
    %128 = arith.mulf %127, %31 : vector<8x128xf32>
    %129 = arith.mulf %128, %125 : vector<8x128xf32>
    %cst_62 = arith.constant dense<0.000000e+00> : vector<128xf32>
    %130 = vector.multi_reduction <add>, %129, %cst_62 [0] : vector<8x128xf32> to vector<128xf32>
    %131 = vector.shape_cast %130 : vector<128xf32> to vector<1x128xf32>
    %cst_63 = arith.constant dense<0.000000e+00> : vector<128xf32>
    %132 = vector.multi_reduction <add>, %128, %cst_63 [0] : vector<8x128xf32> to vector<128xf32>
    %133 = vector.shape_cast %132 : vector<128xf32> to vector<1x128xf32>
    %cst_64 = arith.constant dense<0.000000e+00> : vector<128xf32>
    %134 = vector.multi_reduction <add>, %125, %cst_64 [0] : vector<8x128xf32> to vector<128xf32>
    %135 = vector.shape_cast %134 : vector<128xf32> to vector<1x128xf32>
    %136 = vector.extract_strided_slice %23 {offsets = [2, 0, 0], sizes = [1, 8, 128], strides = [1, 1, 1]} : vector<4x8x128xf32> to vector<1x8x128xf32>
    %137 = vector.shape_cast %136 : vector<1x8x128xf32> to vector<8x128xf32>
    %138 = arith.subf %33, %137 : vector<8x128xf32>
    %139 = arith.mulf %125, %138 : vector<8x128xf32>
    %cst_65 = arith.constant dense<0.000000e+00> : vector<128xf32>
    %140 = vector.multi_reduction <add>, %139, %cst_65 [0] : vector<8x128xf32> to vector<128xf32>
    %141 = vector.shape_cast %140 : vector<128xf32> to vector<1x128xf32>
    %c0_66 = arith.constant 0 : index
    %c8 = arith.constant 8 : index
    %c0_67 = arith.constant 0 : index
    %142 = vector.load %arg4[%c0_66, %c8, %c0_67] : memref<1x16x128xf32, #tpu.memory_space<vmem>>, vector<1x1x128xf32>
    %143 = vector.shape_cast %142 : vector<1x1x128xf32> to vector<1x128xf32>
    %144 = arith.addf %143, %131 : vector<1x128xf32>
    %c0_68 = arith.constant 0 : index
    %c8_69 = arith.constant 8 : index
    %c0_70 = arith.constant 0 : index
    %145 = vector.load %arg4[%c0_68, %c8_69, %c0_70] : memref<1x16x128xf32, #tpu.memory_space<vmem>>, vector<1x1x128xf32>
    %146 = vector.shape_cast %145 : vector<1x1x128xf32> to vector<1x128xf32>
    %147 = vector.shape_cast %144 : vector<1x128xf32> to vector<1x1x128xf32>
    tpu.vector_store %arg4[%c0_68, %c8_69, %c0_70], %147 {strides = array<i32>} : memref<1x16x128xf32, #tpu.memory_space<vmem>>, vector<1x1x128xf32>,
    %c0_71 = arith.constant 0 : index
    %c9 = arith.constant 9 : index
    %c0_72 = arith.constant 0 : index
    %148 = vector.load %arg4[%c0_71, %c9, %c0_72] : memref<1x16x128xf32, #tpu.memory_space<vmem>>, vector<1x1x128xf32>
    %149 = vector.shape_cast %148 : vector<1x1x128xf32> to vector<1x128xf32>
    %150 = arith.addf %149, %133 : vector<1x128xf32>
    %c0_73 = arith.constant 0 : index
    %c9_74 = arith.constant 9 : index
    %c0_75 = arith.constant 0 : index
    %151 = vector.load %arg4[%c0_73, %c9_74, %c0_75] : memref<1x16x128xf32, #tpu.memory_space<vmem>>, vector<1x1x128xf32>
    %152 = vector.shape_cast %151 : vector<1x1x128xf32> to vector<1x128xf32>
    %153 = vector.shape_cast %150 : vector<1x128xf32> to vector<1x1x128xf32>
    tpu.vector_store %arg4[%c0_73, %c9_74, %c0_75], %153 {strides = array<i32>} : memref<1x16x128xf32, #tpu.memory_space<vmem>>, vector<1x1x128xf32>,
    %c0_76 = arith.constant 0 : index
    %c10 = arith.constant 10 : index
    %c0_77 = arith.constant 0 : index
    %154 = vector.load %arg4[%c0_76, %c10, %c0_77] : memref<1x16x128xf32, #tpu.memory_space<vmem>>, vector<1x1x128xf32>
    %155 = vector.shape_cast %154 : vector<1x1x128xf32> to vector<1x128xf32>
    %156 = arith.addf %155, %135 : vector<1x128xf32>
    %c0_78 = arith.constant 0 : index
    %c10_79 = arith.constant 10 : index
    %c0_80 = arith.constant 0 : index
    %157 = vector.load %arg4[%c0_78, %c10_79, %c0_80] : memref<1x16x128xf32, #tpu.memory_space<vmem>>, vector<1x1x128xf32>
    %158 = vector.shape_cast %157 : vector<1x1x128xf32> to vector<1x128xf32>
    %159 = vector.shape_cast %156 : vector<1x128xf32> to vector<1x1x128xf32>
    tpu.vector_store %arg4[%c0_78, %c10_79, %c0_80], %159 {strides = array<i32>} : memref<1x16x128xf32, #tpu.memory_space<vmem>>, vector<1x1x128xf32>,
    %c0_81 = arith.constant 0 : index
    %c11 = arith.constant 11 : index
    %c0_82 = arith.constant 0 : index
    %160 = vector.load %arg4[%c0_81, %c11, %c0_82] : memref<1x16x128xf32, #tpu.memory_space<vmem>>, vector<1x1x128xf32>
    %161 = vector.shape_cast %160 : vector<1x1x128xf32> to vector<1x128xf32>
    %162 = arith.addf %161, %141 : vector<1x128xf32>
    %c0_83 = arith.constant 0 : index
    %c11_84 = arith.constant 11 : index
    %c0_85 = arith.constant 0 : index
    %163 = vector.load %arg4[%c0_83, %c11_84, %c0_85] : memref<1x16x128xf32, #tpu.memory_space<vmem>>, vector<1x1x128xf32>
    %164 = vector.shape_cast %163 : vector<1x1x128xf32> to vector<1x128xf32>
    %165 = vector.shape_cast %162 : vector<1x128xf32> to vector<1x1x128xf32>
    tpu.vector_store %arg4[%c0_83, %c11_84, %c0_85], %165 {strides = array<i32>} : memref<1x16x128xf32, #tpu.memory_space<vmem>>, vector<1x1x128xf32>,
    %c3_i32 = arith.constant 3 : i32
    %166 = vector.broadcast %c3_i32 : i32 to vector<8x128xi32>
    %167 = arith.cmpi eq, %6, %166 : vector<8x128xi32>
    %cst_86 = arith.constant 0.000000e+00 : f32
    %168 = vector.broadcast %cst_86 : f32 to vector<8x128xf32>
    %169 = arith.select %167, %18, %168 : vector<8x128xi1>, vector<8x128xf32>
    %170 = vector.extract_strided_slice %28 {offsets = [3, 0, 0], sizes = [1, 8, 128], strides = [1, 1, 1]} : vector<4x8x128xf32> to vector<1x8x128xf32>
    %171 = vector.shape_cast %170 : vector<1x8x128xf32> to vector<8x128xf32>
    %172 = arith.mulf %171, %31 : vector<8x128xf32>
    %173 = arith.mulf %172, %169 : vector<8x128xf32>
    %cst_87 = arith.constant dense<0.000000e+00> : vector<128xf32>
    %174 = vector.multi_reduction <add>, %173, %cst_87 [0] : vector<8x128xf32> to vector<128xf32>
    %175 = vector.shape_cast %174 : vector<128xf32> to vector<1x128xf32>
    %cst_88 = arith.constant dense<0.000000e+00> : vector<128xf32>
    %176 = vector.multi_reduction <add>, %172, %cst_88 [0] : vector<8x128xf32> to vector<128xf32>
    %177 = vector.shape_cast %176 : vector<128xf32> to vector<1x128xf32>
    %cst_89 = arith.constant dense<0.000000e+00> : vector<128xf32>
    %178 = vector.multi_reduction <add>, %169, %cst_89 [0] : vector<8x128xf32> to vector<128xf32>
    %179 = vector.shape_cast %178 : vector<128xf32> to vector<1x128xf32>
    %180 = vector.extract_strided_slice %23 {offsets = [3, 0, 0], sizes = [1, 8, 128], strides = [1, 1, 1]} : vector<4x8x128xf32> to vector<1x8x128xf32>
    %181 = vector.shape_cast %180 : vector<1x8x128xf32> to vector<8x128xf32>
    %182 = arith.subf %33, %181 : vector<8x128xf32>
    %183 = arith.mulf %169, %182 : vector<8x128xf32>
    %cst_90 = arith.constant dense<0.000000e+00> : vector<128xf32>
    %184 = vector.multi_reduction <add>, %183, %cst_90 [0] : vector<8x128xf32> to vector<128xf32>
    %185 = vector.shape_cast %184 : vector<128xf32> to vector<1x128xf32>
    %c0_91 = arith.constant 0 : index
    %c12 = arith.constant 12 : index
    %c0_92 = arith.constant 0 : index
    %186 = vector.load %arg4[%c0_91, %c12, %c0_92] : memref<1x16x128xf32, #tpu.memory_space<vmem>>, vector<1x1x128xf32>
    %187 = vector.shape_cast %186 : vector<1x1x128xf32> to vector<1x128xf32>
    %188 = arith.addf %187, %175 : vector<1x128xf32>
    %c0_93 = arith.constant 0 : index
    %c12_94 = arith.constant 12 : index
    %c0_95 = arith.constant 0 : index
    %189 = vector.load %arg4[%c0_93, %c12_94, %c0_95] : memref<1x16x128xf32, #tpu.memory_space<vmem>>, vector<1x1x128xf32>
    %190 = vector.shape_cast %189 : vector<1x1x128xf32> to vector<1x128xf32>
    %191 = vector.shape_cast %188 : vector<1x128xf32> to vector<1x1x128xf32>
    tpu.vector_store %arg4[%c0_93, %c12_94, %c0_95], %191 {strides = array<i32>} : memref<1x16x128xf32, #tpu.memory_space<vmem>>, vector<1x1x128xf32>,
    %c0_96 = arith.constant 0 : index
    %c13 = arith.constant 13 : index
    %c0_97 = arith.constant 0 : index
    %192 = vector.load %arg4[%c0_96, %c13, %c0_97] : memref<1x16x128xf32, #tpu.memory_space<vmem>>, vector<1x1x128xf32>
    %193 = vector.shape_cast %192 : vector<1x1x128xf32> to vector<1x128xf32>
    %194 = arith.addf %193, %177 : vector<1x128xf32>
    %c0_98 = arith.constant 0 : index
    %c13_99 = arith.constant 13 : index
    %c0_100 = arith.constant 0 : index
    %195 = vector.load %arg4[%c0_98, %c13_99, %c0_100] : memref<1x16x128xf32, #tpu.memory_space<vmem>>, vector<1x1x128xf32>
    %196 = vector.shape_cast %195 : vector<1x1x128xf32> to vector<1x128xf32>
    %197 = vector.shape_cast %194 : vector<1x128xf32> to vector<1x1x128xf32>
    tpu.vector_store %arg4[%c0_98, %c13_99, %c0_100], %197 {strides = array<i32>} : memref<1x16x128xf32, #tpu.memory_space<vmem>>, vector<1x1x128xf32>,
    %c0_101 = arith.constant 0 : index
    %c14 = arith.constant 14 : index
    %c0_102 = arith.constant 0 : index
    %198 = vector.load %arg4[%c0_101, %c14, %c0_102] : memref<1x16x128xf32, #tpu.memory_space<vmem>>, vector<1x1x128xf32>
    %199 = vector.shape_cast %198 : vector<1x1x128xf32> to vector<1x128xf32>
    %200 = arith.addf %199, %179 : vector<1x128xf32>
    %c0_103 = arith.constant 0 : index
    %c14_104 = arith.constant 14 : index
    %c0_105 = arith.constant 0 : index
    %201 = vector.load %arg4[%c0_103, %c14_104, %c0_105] : memref<1x16x128xf32, #tpu.memory_space<vmem>>, vector<1x1x128xf32>
    %202 = vector.shape_cast %201 : vector<1x1x128xf32> to vector<1x128xf32>
    %203 = vector.shape_cast %200 : vector<1x128xf32> to vector<1x1x128xf32>
    tpu.vector_store %arg4[%c0_103, %c14_104, %c0_105], %203 {strides = array<i32>} : memref<1x16x128xf32, #tpu.memory_space<vmem>>, vector<1x1x128xf32>,
    %c0_106 = arith.constant 0 : index
    %c15 = arith.constant 15 : index
    %c0_107 = arith.constant 0 : index
    %204 = vector.load %arg4[%c0_106, %c15, %c0_107] : memref<1x16x128xf32, #tpu.memory_space<vmem>>, vector<1x1x128xf32>
    %205 = vector.shape_cast %204 : vector<1x1x128xf32> to vector<1x128xf32>
    %206 = arith.addf %205, %185 : vector<1x128xf32>
    %c0_108 = arith.constant 0 : index
    %c15_109 = arith.constant 15 : index
    %c0_110 = arith.constant 0 : index
    %207 = vector.load %arg4[%c0_108, %c15_109, %c0_110] : memref<1x16x128xf32, #tpu.memory_space<vmem>>, vector<1x1x128xf32>
    %208 = vector.shape_cast %207 : vector<1x1x128xf32> to vector<1x128xf32>
    %209 = vector.shape_cast %206 : vector<1x128xf32> to vector<1x1x128xf32>
    tpu.vector_store %arg4[%c0_108, %c15_109, %c0_110], %209 {strides = array<i32>} : memref<1x16x128xf32, #tpu.memory_space<vmem>>, vector<1x1x128xf32>,
    return
  }
  func.func @transform_0(%arg0: i32, %arg1: i32) -> (i32, i32, i32, i32) {
    %c0_i32 = arith.constant 0 : i32
    %c0_i32_0 = arith.constant 0 : i32
    %c0_i32_1 = arith.constant 0 : i32
    return %arg0, %c0_i32, %arg1, %c0_i32_0 : i32, i32, i32, i32
  }
  func.func @transform_1(%arg0: i32, %arg1: i32) -> (i32, i32, i32) {
    %c0_i32 = arith.constant 0 : i32
    %c0_i32_0 = arith.constant 0 : i32
    return %arg0, %arg1, %c0_i32 : i32, i32, i32
  }
  func.func @transform_2(%arg0: i32, %arg1: i32) -> (i32, i32, i32) {
    %c0_i32 = arith.constant 0 : i32
    %c0_i32_0 = arith.constant 0 : i32
    %c0_i32_1 = arith.constant 0 : i32
    return %arg0, %c0_i32, %c0_i32_0 : i32, i32, i32
  }
}

</mosaic_0001>

<llo_original>
// kernel: tpu_custom_call.1
$region0: #{tpu_custom_call.1}
  #allocation0 [shape = 'u32[]', space=smem, size = 0x4, offset = 0x4, fixed_abs, tag = 'smem constant byte address 0x4 - core index']
  #allocation1 [shape = 'u32[72,128]{1,0:T(1,128)}', space=vmem, size = 0x9000, scoped, tag = 'internal scratch']
  %s0 = inlined_call_operand.hbm [shape: f32[2,4,8,128], index: 0, kind: input, shape index: {}]
  %s1 = inlined_call_operand.hbm [shape: s32[2,8,128], index: 1, kind: input, shape index: {}]
  %s2 = inlined_call_operand.hbm [shape: f32[2,16,128], index: 2, kind: output, shape index: {}]
  %s3 = sld [smem:[#allocation0]]
  $region53: #{tpu_custom_call.1} parent=0
    _
  %s5 = ssub.s32 1, %s3
  %s6 = scalar_select 0, %s5, %s3
  $region1: #{tpu_custom_call.1} parent=0
    #allocation2 [shape = 'u8[32768]{0}', space=vmem, size = 0x8000, scoped, tag = 'input window, operand 0']
    #allocation3 [shape = 's32[2]{0}', space=sflag, size = 0x8, scoped, tag = 'scoped memory for tpu_custom_call.1']
    #allocation4 [shape = 's32[2]{0}', space=sflag, size = 0x8, scoped, tag = 'scoped memory for tpu_custom_call.1']
    #allocation5 [shape = 'u8[8192]{0}', space=vmem, size = 0x2000, scoped, tag = 'input window, operand 1']
    #allocation6 [shape = 's32[2]{0}', space=sflag, size = 0x8, scoped, tag = 'scoped memory for tpu_custom_call.1']
    #allocation7 [shape = 'u8[16384]{0}', space=vmem, size = 0x4000, scoped, tag = 'output window, operand 0']
    %7 = vsyncpa [#allocation3], 0
    %s8 = scalar_lea.sflag [#allocation3], 1
    %9 = vsyncpa %s8, 0
    %10 = vsyncpa [#allocation6], 0
    %s11 = scalar_lea.sflag [#allocation6], 1
    %12 = vsyncpa %s11, 0
    %13 = vsyncpa [#allocation4], 0
    %s14 = scalar_lea.sflag [#allocation4], 1
    %15 = vsyncpa %s14, 0
    loop: start=0, step=1, limit=4
    $region2: #{tpu_custom_call.1} parent=1 // loop_pre_header
      _
    $region3: #{tpu_custom_call.1} parent=1 // loop_header
      %s17 = sphi 0, %s21
      %p18 = scmp.ge.s32.totalorder %s17, 4
      %s24 = sphi 0, %s36
      %s25 = sphi 0, %s32
      %s26 = sphi 0, %s24
      %s27 = sphi 0, %s25
      %s28 = sphi 0, %s26
      %s29 = sphi 0, %s27
      %s41 = sphi 0, %s43
      %s44 = sphi 0, %s41
      %s45 = sphi 0, %s44
      %s61 = sphi 0, %s45
      %s69 = sphi 0, %s71
      %s72 = sphi 0, %s69
      %s73 = sphi 0, %s72
      %s89 = sphi 0, %s73
      %s95 = sphi 0, %s97
      %s98 = sphi 0, %s95
      %s99 = sphi 0, %s98
      %s115 = sphi 0, %s99
    $region4: #{tpu_custom_call.1} parent=1 // loop_header_branch
      %20 = sbr.rel (%p18) target = $region8
    $region5: #{tpu_custom_call.1} parent=1 // loop_body
      %s22 = ssub.s32 %s17, 1
      %s23 = ssub.s32 %s17, 2
      %s30 = sadd.s32 1, %s25
      %p31 = scmp.ge.s32.totalorder %s30, 1
      %s32 = scalar_select %p31, 0, %s30
      %s33 = sadd.s32 1, %s24
      %s34 = scalar_select %p31, %s33, %s24
      %p35 = scmp.ge.s32.totalorder %s34, 2
      %s36 = scalar_select %p35, 0, %s34
      %s37 = ssub.s32 %s24, %s36
      %s38 = ssub.s32 %s25, %s32
      %s39 = sor.u32 %s37, %s38
      %p40 = scmp.eq.s32.totalorder %s39, 0
      %s42 = sadd.s32 %s41, 1
      %s43 = scalar_select %p40, %s41, %s42
      %p46 = pneg %p40
      %p47 = scmp.eq.s32.totalorder %s17, 1
      %p48 = por %p46, %p47
      %p49 = scmp.ne.s32.totalorder %s41, %s44
      %p50 = scmp.eq.s32.totalorder %s17, 0
      %p51 = por %p49, %p50
      %p52 = scmp.ne.s32.totalorder %s41, %s44
      %p53 = scmp.eq.s32.totalorder %s22, 1
      %p54 = por %p52, %p53
      %p55 = scmp.ne.s32.totalorder %s44, %s45
      %p56 = scmp.eq.s32.totalorder %s22, 0
      %p57 = por %p55, %p56
      %p58 = scmp.ne.s32.totalorder %s44, %s45
      %p59 = scmp.eq.s32.totalorder %s23, 1
      %p60 = por %p58, %p59
      %p62 = scmp.ne.s32.totalorder %s45, %s61
      %p63 = scmp.eq.s32.totalorder %s23, 0
      %p64 = por %p62, %p63
      %s65 = ssub.s32 %s24, %s36
      %s66 = ssub.s32 %s25, %s32
      %s67 = sor.u32 %s65, %s66
      %p68 = scmp.eq.s32.totalorder %s67, 0
      %s70 = sadd.s32 %s69, 1
      %s71 = scalar_select %p68, %s69, %s70
      %p74 = pneg %p68
      %p75 = scmp.eq.s32.totalorder %s17, 1
      %p76 = por %p74, %p75
      %p77 = scmp.ne.s32.totalorder %s69, %s72
      %p78 = scmp.eq.s32.totalorder %s17, 0
      %p79 = por %p77, %p78
      %p80 = scmp.ne.s32.totalorder %s69, %s72
      %p81 = scmp.eq.s32.totalorder %s22, 1
      %p82 = por %p80, %p81
      %p83 = scmp.ne.s32.totalorder %s72, %s73
      %p84 = scmp.eq.s32.totalorder %s22, 0
      %p85 = por %p83, %p84
      %p86 = scmp.ne.s32.totalorder %s72, %s73
      %p87 = scmp.eq.s32.totalorder %s23, 1
      %p88 = por %p86, %p87
      %p90 = scmp.ne.s32.totalorder %s73, %s89
      %p91 = scmp.eq.s32.totalorder %s23, 0
      %p92 = por %p90, %p91
      %s93 = ssub.s32 %s24, %s36
      %p94 = scmp.eq.s32.totalorder %s93, 0
      %s96 = sadd.s32 %s95, 1
      %s97 = scalar_select %p94, %s95, %s96
      %p100 = pneg %p94
      %p101 = scmp.eq.s32.totalorder %s17, 1
      %p102 = por %p100, %p101
      %p103 = scmp.ne.s32.totalorder %s95, %s98
      %p104 = scmp.eq.s32.totalorder %s17, 0
      %p105 = por %p103, %p104
      %p106 = scmp.ne.s32.totalorder %s95, %s98
      %p107 = scmp.eq.s32.totalorder %s22, 1
      %p108 = por %p106, %p107
      %p109 = scmp.ne.s32.totalorder %s98, %s99
      %p110 = scmp.eq.s32.totalorder %s22, 0
      %p111 = por %p109, %p110
      %p112 = scmp.ne.s32.totalorder %s98, %s99
      %p113 = scmp.eq.s32.totalorder %s23, 1
      %p114 = por %p112, %p113
      %p116 = scmp.ne.s32.totalorder %s99, %s115
      %p117 = scmp.eq.s32.totalorder %s23, 0
      %p118 = por %p116, %p117
      %p119 = scmp.le.s32.totalorder 1, %s17
      %p120 = scmp.lt.s32.totalorder %s17, 3
      %p121 = pnand %p119, %p120
      %p122 = pneg %p121
      // Predicated region
      $region9: #{tpu_custom_call.1} parent=5 // pred_check
        _
      $region10: #{tpu_custom_call.1} parent=5 // pred_check_branch
        %124 = sbr.rel (%p121) target = $region12
      $region11: #{tpu_custom_call.1} parent=5 // pred_region
        %s125 = ssub.s32 %s17, 1
      $region12: #{tpu_custom_call.1} parent=5 // pred_fallthru
        _
      %p126 = scmp.lt.s32.totalorder %s17, 2
      // Predicated region
      $region13: #{tpu_custom_call.1} parent=5 // pred_check
        %p127 = pneg %p126
      $region14: #{tpu_custom_call.1} parent=5 // pred_check_branch
        %129 = sbr.rel (%p127) target = $region16
      $region15: #{tpu_custom_call.1} parent=5 // pred_region
        // Predicated region
        $region17: #{tpu_custom_call.1} parent=15 // pred_check
          %p130 = pneg %p51
        $region18: #{tpu_custom_call.1} parent=15 // pred_check_branch
          %132 = sbr.rel (%p130) target = $region20
        $region19: #{tpu_custom_call.1} parent=15 // pred_region
          %s133 = sand.u32 %s41, 1
          %s134 = scalar_lea.sflag [#allocation3], %s133
          %s135 = sand.u32 %s41, 1
          %s136 = smul.addr %s135, 32
          %s137 = scalar_lea.vmem [#allocation2], %s136
          %139 = vsyncadd %s134, 0
          %s140 = smul.addr %s24, 4
          %s141 = sadd.s32 %s25, %s140
          %s142 = smul.addr %s141, 8
          %s143 = scalar_lea.hbm %s0, %s142
          %s144 = sshll.u32 %s143, 4
          %s145 = int_to_ptr.hbm [resolvable:$true] %s144
          %s146 = sshll.u32 %s137, 4
          %s147 = int_to_ptr.vmem [resolvable:$true] %s146
          %152 = dma.hbm_to_vmem [thread:$0]  %s145, 512, %s147, %s134, 128, 128, 8
        $region20: #{tpu_custom_call.1} parent=15 // pred_fallthru
          _
        // Predicated region
        $region21: #{tpu_custom_call.1} parent=15 // pred_check
          %p153 = pneg %p79
        $region22: #{tpu_custom_call.1} parent=15 // pred_check_branch
          %155 = sbr.rel (%p153) target = $region24
        $region23: #{tpu_custom_call.1} parent=15 // pred_region
          %s156 = sand.u32 %s69, 1
          %s157 = scalar_lea.sflag [#allocation6], %s156
          %s158 = sand.u32 %s69, 1
          %s159 = smul.addr %s158, 8
          %s160 = scalar_lea.vmem [#allocation5], %s159
          %162 = vsyncadd %s157, 0
          %s163 = sadd.s32 %s25, %s24
          %s164 = smul.addr %s163, 8
          %s165 = scalar_lea.hbm %s1, %s164
          %s167 = sshll.u32 %s165, 4
          %s168 = int_to_ptr.hbm [resolvable:$true] %s167
          %s169 = sshll.u32 %s160, 4
          %s170 = int_to_ptr.vmem [resolvable:$true] %s169
          %172 = dma.hbm_to_vmem [thread:$0]  %s168, 128, %s170, %s157
        $region24: #{tpu_custom_call.1} parent=15 // pred_fallthru
          _
      $region16: #{tpu_custom_call.1} parent=5 // pred_fallthru
        _
      %p173 = scmp.le.s32.totalorder 1, %s17
      %p174 = scmp.lt.s32.totalorder %s17, 3
      %p175 = pnand %p173, %p174
      %p176 = pneg %p175
      // Predicated region
      $region25: #{tpu_custom_call.1} parent=5 // pred_check
        _
      $region26: #{tpu_custom_call.1} parent=5 // pred_check_branch
        %178 = sbr.rel (%p175) target = $region28
      $region27: #{tpu_custom_call.1} parent=5 // pred_region
        %s179 = ssub.s32 %s17, 1
        %s180 = sand.u32 %s44, 1
        %s181 = scalar_lea.sflag [#allocation3], %s180
        %s182 = sand.u32 %s44, 1
        %s183 = smul.addr %s182, 32
        %s184 = scalar_lea.vmem [#allocation2], %s183
        // Predicated region
        $region29: #{tpu_custom_call.1} parent=27 // pred_check
          %p185 = pneg %p57
        $region30: #{tpu_custom_call.1} parent=27 // pred_check_branch
          %187 = sbr.rel (%p185) target = $region32
        $region31: #{tpu_custom_call.1} parent=27 // pred_region
          %189 = dma.done %s181, 512
        $region32: #{tpu_custom_call.1} parent=27 // pred_fallthru
          _
        %s190 = sand.u32 %s72, 1
        %s191 = scalar_lea.sflag [#allocation6], %s190
        %s192 = sand.u32 %s72, 1
        %s193 = smul.addr %s192, 8
        %s194 = scalar_lea.vmem [#allocation5], %s193
        // Predicated region
        $region33: #{tpu_custom_call.1} parent=27 // pred_check
          %p195 = pneg %p85
        $region34: #{tpu_custom_call.1} parent=27 // pred_check_branch
          %197 = sbr.rel (%p195) target = $region36
        $region35: #{tpu_custom_call.1} parent=27 // pred_region
          %199 = dma.done %s191, 128
        $region36: #{tpu_custom_call.1} parent=27 // pred_fallthru
          _
        %s200 = sand.u32 %s44, 1
        %s201 = scalar_lea.sflag [#allocation3], %s200
        %s202 = sand.u32 %s44, 1
        %s203 = smul.addr %s202, 32
        %s204 = scalar_lea.vmem [#allocation2], %s203
        %p205 = pneg %p57
        %p206 = pneg %p54
        %s207 = sand.u32 %s72, 1
        %s208 = scalar_lea.sflag [#allocation6], %s207
        %s209 = sand.u32 %s72, 1
        %s210 = smul.addr %s209, 8
        %s211 = scalar_lea.vmem [#allocation5], %s210
        %p212 = pneg %p85
        %p213 = pneg %p82
        %p214 = pneg %p111
        %p215 = pneg %p108
        %s216 = sand.u32 %s98, 1
        %s217 = scalar_lea.sflag [#allocation4], %s216
        %s218 = sand.u32 %s98, 1
        %s219 = smul.addr %s218, 16
        %s220 = scalar_lea.vmem [#allocation7], %s219
        %p221 = scmp.eq.s32.totalorder %s27, 0
        // Predicated region
        $region37: #{tpu_custom_call.1} parent=27 // pred_check
          %p222 = pneg %p221
        $region38: #{tpu_custom_call.1} parent=27 // pred_check_branch
          %224 = sbr.rel (%p222) target = $region40
        $region39: #{tpu_custom_call.1} parent=27 // pred_region
          %225 = vst [vmem:[%s220] sm:$0xff] 0.0
          %226 = vst [vmem:[%s220 + $0x8] sm:$0xff] 0.0
        $region40: #{tpu_custom_call.1} parent=27 // pred_fallthru
          _
        %v227 = vld [vmem:[%s184] sm:$0xff]
        %v228 = vld [vmem:[%s184 + $0x8] sm:$0xff]
        %v229 = vld [vmem:[%s184 + $0x10] sm:$0xff]
        %v230 = vld [vmem:[%s184 + $0x18] sm:$0xff]
        %v231 = vld [vmem:[%s194] sm:$0xff]
        %v232 = vlaneseq
        %v233 = vshrl.u32 %v232, 7
        %v234 = vlaneseq
        %v235 = vand.u32 %v234, 127
        %s236 = smul.u32 %s27, 8
        %v237 = vstv %s236
        %v238 = vadd.s32 %v237, %v233
        %v239 = vmul.u32 %v238, 128
        %v240 = vadd.s32 %v239, %v235
        %vm241 = vcmp.lt.s32.totalorder %v240, 256
        %v242 = vsel %vm241, 1, 0
        %v243 = vcvt.s32.f32 %v242
        %vm244 = vcmp.eq.s32.totalorder %v242, 1
        %v245 = vsel %vm244, %v227, 0.0
        %v246 = vsel %vm244, %v228, 0.0
        %v247 = vsel %vm244, %v229, 0.0
        %v248 = vsel %vm244, %v230, 0.0
        %v249 = vmax.f32 %v245, %v246
        %v250 = vmax.f32 %v247, %v248
        %v251 = vmax.f32 %v249, %v250
        %v252 = vsub.f32 %v245, %v251
        %v253 = vsub.f32 %v246, %v251
        %v254 = vsub.f32 %v247, %v251
        %v255 = vsub.f32 %v248, %v251
        %v256 = vmul.f32 %v252, 1.442695
        %v257 = vpow.pop %v256
        %v258 = vmul.f32 %v253, 1.442695
        %v259 = vpow.pop %v258
        %v260 = vmul.f32 %v254, 1.442695
        %v261 = vpow.pop %v260
        %v262 = vmul.f32 %v255, 1.442695
        %v263 = vpow.pop %v262
        %v264 = vadd.f32 %v257, %v259
        %v265 = vadd.f32 %v264, %v261
        %v266 = vadd.f32 %v265, %v263
        %v267 = vrcp.pop %v266
        %v268 = vmul.f32 %v266, %v267
        %v269 = vsub.f32 1.0, %v268
        %v270 = vmul.f32 %v267, %v269
        %v271 = vadd.f32 %v267, %v270
        %vm272 = vweird.f32 %v266
        %vm273 = vweird.f32 %v267
        %vm274 = vmor %vm272, %vm273
        %v275 = vsel %vm274, %v267, %v271
        %v276 = vand.u32 2147483647, %v266
        %vm277 = vcmp.eq.f32.partialorder %v276, 8.507059e+37
        %v278 = vand.u32 %v266, 2147483648
        %v279 = vor.u32 1.1754944e-38, %v278
        %v280 = vsel %vm277, %v279, %v275
        %v281 = vmul.f32 %v280, %v243
        %v282 = vlog2.pop %v266
        %v283 = vmul.f32 %v282, 0.6931472
        %v284 = vadd.f32 %v251, %v283
        %vm285 = vcmp.eq.s32.totalorder %v231, 0
        %v286 = vsel %vm285, %v243, 0.0
        %v287 = vmul.f32 %v257, %v281
        %v288 = vmul.f32 %v287, %v286
        %v289 = vrot.slane %v288, 4
        %v290 = vadd.f32 %v288, %v289
        %v291 = vrot.slane %v290, 2
        %v292 = vadd.f32 %v290, %v291
        %v293 = vrot.slane %v292, 1
        %v294 = vadd.f32 %v292, %v293
        %v295 = vrot.slane %v287, 4
        %v296 = vadd.f32 %v287, %v295
        %v297 = vrot.slane %v296, 2
        %v298 = vadd.f32 %v296, %v297
        %v299 = vrot.slane %v298, 1
        %v300 = vadd.f32 %v298, %v299
        %v301 = vrot.slane %v286, 4
        %v302 = vadd.f32 %v286, %v301
        %v303 = vrot.slane %v302, 2
        %v304 = vadd.f32 %v302, %v303
        %v305 = vrot.slane %v304, 1
        %v306 = vadd.f32 %v304, %v305
        %v307 = vsub.f32 %v284, %v245
        %v308 = vmul.f32 %v286, %v307
        %v309 = vrot.slane %v308, 4
        %v310 = vadd.f32 %v308, %v309
        %v311 = vrot.slane %v310, 2
        %v312 = vadd.f32 %v310, %v311
        %v313 = vrot.slane %v312, 1
        %v314 = vadd.f32 %v312, %v313
        %v315 = vld [vmem:[%s220] sm:$0x1]
        %v316 = vadd.f32 %v315, %v294
        %317 = vst [vmem:[%s220] sm:$0x1] %v316
        %v318 = vld [vmem:[%s220 + $0x1] sm:$0x1]
        %v319 = vadd.f32 %v318, %v300
        %320 = vst [vmem:[%s220 + $0x1] sm:$0x1] %v319
        %v321 = vld [vmem:[%s220 + $0x2] sm:$0x1]
        %v322 = vadd.f32 %v321, %v306
        %323 = vst [vmem:[%s220 + $0x2] sm:$0x1] %v322
        %v324 = vld [vmem:[%s220 + $0x3] sm:$0x1]
        %v325 = vadd.f32 %v324, %v314
        %326 = vst [vmem:[%s220 + $0x3] sm:$0x1] %v325
        %vm327 = vcmp.eq.s32.totalorder %v231, 1
        %v328 = vsel %vm327, %v243, 0.0
        %v329 = vmul.f32 %v259, %v281
        %v330 = vmul.f32 %v329, %v328
        %v331 = vrot.slane %v330, 4
        %v332 = vadd.f32 %v330, %v331
        %v333 = vrot.slane %v332, 2
        %v334 = vadd.f32 %v332, %v333
        %v335 = vrot.slane %v334, 1
        %v336 = vadd.f32 %v334, %v335
        %v337 = vrot.slane %v329, 4
        %v338 = vadd.f32 %v329, %v337
        %v339 = vrot.slane %v338, 2
        %v340 = vadd.f32 %v338, %v339
        %v341 = vrot.slane %v340, 1
        %v342 = vadd.f32 %v340, %v341
        %v343 = vrot.slane %v328, 4
        %v344 = vadd.f32 %v328, %v343
        %v345 = vrot.slane %v344, 2
        %v346 = vadd.f32 %v344, %v345
        %v347 = vrot.slane %v346, 1
        %v348 = vadd.f32 %v346, %v347
        %v349 = vsub.f32 %v284, %v246
        %v350 = vmul.f32 %v328, %v349
        %v351 = vrot.slane %v350, 4
        %v352 = vadd.f32 %v350, %v351
        %v353 = vrot.slane %v352, 2
        %v354 = vadd.f32 %v352, %v353
        %v355 = vrot.slane %v354, 1
        %v356 = vadd.f32 %v354, %v355
        %v357 = vld [vmem:[%s220 + $0x4] sm:$0x1]
        %v358 = vadd.f32 %v357, %v336
        %359 = vst [vmem:[%s220 + $0x4] sm:$0x1] %v358
        %v360 = vld [vmem:[%s220 + $0x5] sm:$0x1]
        %v361 = vadd.f32 %v360, %v342
        %362 = vst [vmem:[%s220 + $0x5] sm:$0x1] %v361
        %v363 = vld [vmem:[%s220 + $0x6] sm:$0x1]
        %v364 = vadd.f32 %v363, %v348
        %365 = vst [vmem:[%s220 + $0x6] sm:$0x1] %v364
        %v366 = vld [vmem:[%s220 + $0x7] sm:$0x1]
        %v367 = vadd.f32 %v366, %v356
        %368 = vst [vmem:[%s220 + $0x7] sm:$0x1] %v367
        %vm369 = vcmp.eq.s32.totalorder %v231, 2
        %v370 = vsel %vm369, %v243, 0.0
        %v371 = vmul.f32 %v261, %v281
        %v372 = vmul.f32 %v371, %v370
        %v373 = vrot.slane %v372, 4
        %v374 = vadd.f32 %v372, %v373
        %v375 = vrot.slane %v374, 2
        %v376 = vadd.f32 %v374, %v375
        %v377 = vrot.slane %v376, 1
        %v378 = vadd.f32 %v376, %v377
        %v379 = vrot.slane %v371, 4
        %v380 = vadd.f32 %v371, %v379
        %v381 = vrot.slane %v380, 2
        %v382 = vadd.f32 %v380, %v381
        %v383 = vrot.slane %v382, 1
        %v384 = vadd.f32 %v382, %v383
        %v385 = vrot.slane %v370, 4
        %v386 = vadd.f32 %v370, %v385
        %v387 = vrot.slane %v386, 2
        %v388 = vadd.f32 %v386, %v387
        %v389 = vrot.slane %v388, 1
        %v390 = vadd.f32 %v388, %v389
        %v391 = vsub.f32 %v284, %v247
        %v392 = vmul.f32 %v370, %v391
        %v393 = vrot.slane %v392, 4
        %v394 = vadd.f32 %v392, %v393
        %v395 = vrot.slane %v394, 2
        %v396 = vadd.f32 %v394, %v395
        %v397 = vrot.slane %v396, 1
        %v398 = vadd.f32 %v396, %v397
        %v399 = vld [vmem:[%s220 + $0x8] sm:$0x1]
        %v400 = vadd.f32 %v399, %v378
        %401 = vst [vmem:[%s220 + $0x8] sm:$0x1] %v400
        %v402 = vld [vmem:[%s220 + $0x9] sm:$0x1]
        %v403 = vadd.f32 %v402, %v384
        %404 = vst [vmem:[%s220 + $0x9] sm:$0x1] %v403
        %v405 = vld [vmem:[%s220 + $0xa] sm:$0x1]
        %v406 = vadd.f32 %v405, %v390
        %407 = vst [vmem:[%s220 + $0xa] sm:$0x1] %v406
        %v408 = vld [vmem:[%s220 + $0xb] sm:$0x1]
        %v409 = vadd.f32 %v408, %v398
        %410 = vst [vmem:[%s220 + $0xb] sm:$0x1] %v409
        %vm411 = vcmp.eq.s32.totalorder %v231, 3
        %v412 = vsel %vm411, %v243, 0.0
        %v413 = vmul.f32 %v263, %v281
        %v414 = vmul.f32 %v413, %v412
        %v415 = vrot.slane %v414, 4
        %v416 = vadd.f32 %v414, %v415
        %v417 = vrot.slane %v416, 2
        %v418 = vadd.f32 %v416, %v417
        %v419 = vrot.slane %v418, 1
        %v420 = vadd.f32 %v418, %v419
        %v421 = vrot.slane %v413, 4
        %v422 = vadd.f32 %v413, %v421
        %v423 = vrot.slane %v422, 2
        %v424 = vadd.f32 %v422, %v423
        %v425 = vrot.slane %v424, 1
        %v426 = vadd.f32 %v424, %v425
        %v427 = vrot.slane %v412, 4
        %v428 = vadd.f32 %v412, %v427
        %v429 = vrot.slane %v428, 2
        %v430 = vadd.f32 %v428, %v429
        %v431 = vrot.slane %v430, 1
        %v432 = vadd.f32 %v430, %v431
        %v433 = vsub.f32 %v284, %v248
        %v434 = vmul.f32 %v412, %v433
        %v435 = vrot.slane %v434, 4
        %v436 = vadd.f32 %v434, %v435
        %v437 = vrot.slane %v436, 2
        %v438 = vadd.f32 %v436, %v437
        %v439 = vrot.slane %v438, 1
        %v440 = vadd.f32 %v438, %v439
        %v441 = vld [vmem:[%s220 + $0xc] sm:$0x1]
        %v442 = vadd.f32 %v441, %v420
        %443 = vst [vmem:[%s220 + $0xc] sm:$0x1] %v442
        %v444 = vld [vmem:[%s220 + $0xd] sm:$0x1]
        %v445 = vadd.f32 %v444, %v426
        %446 = vst [vmem:[%s220 + $0xd] sm:$0x1] %v445
        %v447 = vld [vmem:[%s220 + $0xe] sm:$0x1]
        %v448 = vadd.f32 %v447, %v432
        %449 = vst [vmem:[%s220 + $0xe] sm:$0x1] %v448
        %v450 = vld [vmem:[%s220 + $0xf] sm:$0x1]
        %v451 = vadd.f32 %v450, %v440
        %452 = vst [vmem:[%s220 + $0xf] sm:$0x1] %v451
        %s453 = sand.u32 %s98, 1
        %s454 = scalar_lea.sflag [#allocation4], %s453
        %s455 = sand.u32 %s98, 1
        %s456 = smul.addr %s455, 16
        %s457 = scalar_lea.vmem [#allocation7], %s456
        // Predicated region
        $region41: #{tpu_custom_call.1} parent=27 // pred_check
          %p458 = pneg %p108
        $region42: #{tpu_custom_call.1} parent=27 // pred_check_branch
          %460 = sbr.rel (%p458) target = $region44
        $region43: #{tpu_custom_call.1} parent=27 // pred_region
          %462 = vsyncadd %s454, 0
          %s463 = smul.addr %s26, 2
          %s464 = smul.addr %s463, 8
          %s465 = scalar_lea.hbm %s2, %s464
          %s466 = sshll.u32 %s457, 4
          %s467 = int_to_ptr.vmem [resolvable:$true] %s466
          %s468 = sshll.u32 %s465, 4
          %s469 = int_to_ptr.hbm [resolvable:$true] %s468
          %474 = dma.vmem_to_hbm [thread:$0]  %s467, 256, %s469, %s454, 128, 128, 8
        $region44: #{tpu_custom_call.1} parent=27 // pred_fallthru
          _
      $region28: #{tpu_custom_call.1} parent=5 // pred_fallthru
        _
      %p475 = scmp.le.s32.totalorder 2, %s17
      // Predicated region
      $region45: #{tpu_custom_call.1} parent=5 // pred_check
        %p476 = pneg %p475
      $region46: #{tpu_custom_call.1} parent=5 // pred_check_branch
        %478 = sbr.rel (%p476) target = $region48
      $region47: #{tpu_custom_call.1} parent=5 // pred_region
        %s479 = ssub.s32 %s17, 2
        // Predicated region
        $region49: #{tpu_custom_call.1} parent=47 // pred_check
          %p480 = pneg %p114
        $region50: #{tpu_custom_call.1} parent=47 // pred_check_branch
          %482 = sbr.rel (%p480) target = $region52
        $region51: #{tpu_custom_call.1} parent=47 // pred_region
          %s483 = sand.u32 %s99, 1
          %s484 = scalar_lea.sflag [#allocation4], %s483
          %s485 = sand.u32 %s99, 1
          %s486 = smul.addr %s485, 16
          %s487 = scalar_lea.vmem [#allocation7], %s486
          %489 = dma.done %s484, 256
        $region52: #{tpu_custom_call.1} parent=47 // pred_fallthru
          _
      $region48: #{tpu_custom_call.1} parent=5 // pred_fallthru
        _
    $region6: #{tpu_custom_call.1} parent=1 // loop_footer
      %s21 = sadd.s32 1, %s17
    $region7: #{tpu_custom_call.1} parent=1 // loop_footer_branch
      %16 = sbr.rel target = $region3
    $region8: #{tpu_custom_call.1} parent=1 // loop_exit
      _
    %490 = vsyncpa [#allocation3], 1
    %s491 = scalar_lea.sflag [#allocation3], 1
    %492 = vsyncpa %s491, 1
    %493 = vsyncpa [#allocation6], 1
    %s494 = scalar_lea.sflag [#allocation6], 1
    %495 = vsyncpa %s494, 1
    %496 = vsyncpa [#allocation4], 1
    %s497 = scalar_lea.sflag [#allocation4], 1
    %498 = vsyncpa %s497, 1

</llo_original>
